<compile_context>
chip_gen: v7x
topology: tpu7x:2x2x1
jax: 0.10.0
libtpu: 0.0.40
codegen_flags: <defaults>
</compile_context>

<pallas_src>
import math

import jax
import jax.numpy as jnp
from jax.experimental import pallas as pl
from jax.experimental.pallas import tpu as pltpu


def _round_up(n, m):
    return ((n + m - 1) // m) * m


def _gelu_exact(x):
    # Matches torch.nn.functional.gelu default (erf formulation), in f32.
    return 0.5 * x * (1.0 + jax.lax.erf(x * (1.0 / math.sqrt(2.0))))


def _nonlinear_head_kernel(x_ref, w1_ref, b1_ref, w2_ref, b2_ref, o_ref):
    # linear1 on the MXU: (TM, D_in) @ (D_in, H) -> f32 accumulation.
    h = jnp.dot(x_ref[...], w1_ref[...], preferred_element_type=jnp.float32)
    h = h + b1_ref[...]                      # (1, H) bias broadcast, f32
    h = _gelu_exact(h)                       # GELU in f32 (erf -> EUP)
    # linear2 on the MXU: cast intermediate to the weight compute dtype
    # (bf16) to halve vreg/VMEM pressure; accumulate in f32.
    y = jnp.dot(h.astype(w2_ref.dtype), w2_ref[...],
                preferred_element_type=jnp.float32)
    y = y + b2_ref[...]                      # (1, D_out) bias broadcast, f32
    o_ref[...] = y.astype(o_ref.dtype)


def nonlinear_head(x, w1, b1, w2, b2, *, compute_dtype=jnp.bfloat16, tm=None):
    """Fused NonLinearHead forward.

    x : (M, input_dim)
    w1: (input_dim, hidden)   b1: (hidden,)
    w2: (hidden, out_dim)     b2: (out_dim,)
    Returns (M, out_dim) in w1.dtype (the module does x.type_as(weight)).

    compute_dtype: dtype fed to the MXU (bf16 by default; accumulation is
    always f32, biases/GELU always f32).
    """
    out_dtype = w1.dtype
    x = x.astype(out_dtype)                  # x.type_as(linear1.weight)
    M, D_in = x.shape
    H = w1.shape[1]
    D_out = w2.shape[1]

    # Lane-dense feature dims: pad hidden / output features to multiples of
    # 128 so loads of w1/w2 and stores of the output use full vregs.
    H_p = _round_up(max(H, 1), 128)
    Do_p = _round_up(max(D_out, 1), 128)

    # Row tile: multiple of 8 (sublane), capped so 2x double-buffered x/out
    # tiles + resident weights fit VMEM on every generation (incl. v7x 64MiB).
    if tm is None:
        tm = min(512, _round_up(M, 8))
    tm = max(8, _round_up(tm, 8))
    M_p = _round_up(M, tm)

    # Zero-pad (exact: padded h columns are gelu(0+0)=0 and multiply zero
    # rows of w2; padded rows of x are sliced away at the end).
    x_p = jnp.pad(x, ((0, M_p - M), (0, 0))).astype(compute_dtype)
    w1_p = jnp.pad(w1, ((0, 0), (0, H_p - H))).astype(compute_dtype)
    b1_p = jnp.pad(b1, (0, H_p - H)).reshape(1, H_p).astype(jnp.float32)
    w2_p = jnp.pad(w2, ((0, H_p - H), (0, Do_p - D_out))).astype(compute_dtype)
    b2_p = jnp.pad(b2, (0, Do_p - D_out)).reshape(1, Do_p).astype(jnp.float32)

    grid = (M_p // tm,)

    out = pl.pallas_call(
        _nonlinear_head_kernel,
        out_shape=jax.ShapeDtypeStruct((M_p, Do_p), out_dtype),
        grid_spec=pl.GridSpec(
            grid=grid,
            in_specs=[
                # x tiles stream over M.
                pl.BlockSpec((tm, D_in), lambda i: (i, 0)),
                # Weights / biases: constant index map -> VMEM-resident.
                pl.BlockSpec((D_in, H_p), lambda i: (0, 0)),
                pl.BlockSpec((1, H_p), lambda i: (0, 0)),
                pl.BlockSpec((H_p, Do_p), lambda i: (0, 0)),
                pl.BlockSpec((1, Do_p), lambda i: (0, 0)),
            ],
            out_specs=pl.BlockSpec((tm, Do_p), lambda i: (i, 0)),
        ),
        compiler_params=pltpu.CompilerParams(
            dimension_semantics=("parallel",),      # megacore-shard the M axis
            vmem_limit_bytes=64 * 1024 * 1024,
        ),
    )(x_p, w1_p, b1_p, w2_p, b2_p)

    return out[:M, :D_out]


def init_params(key, input_dim, out_dim, hidden=None, dtype=jnp.float32):
    """Deterministic synthetic init mirroring nn.Linear default (uniform)."""
    hidden = input_dim if hidden is None else hidden
    k1, k2, k3, k4 = jax.random.split(key, 4)
    bound1 = 1.0 / math.sqrt(input_dim)
    bound2 = 1.0 / math.sqrt(hidden)
    # Stored already transposed: (in_features, out_features).
    w1 = jax.random.uniform(k1, (input_dim, hidden), dtype, -bound1, bound1)
    b1 = jax.random.uniform(k2, (hidden,), dtype, -bound1, bound1)
    w2 = jax.random.uniform(k3, (hidden, out_dim), dtype, -bound2, bound2)
    b2 = jax.random.uniform(k4, (out_dim,), dtype, -bound2, bound2)
    return w1, b1, w2, b2


def _reference(x, w1, b1, w2, b2, compute_dtype=jnp.bfloat16):
    """Plain-JAX reference mirroring the same bf16-in / f32-acc math."""
    x = x.astype(w1.dtype)
    h = jnp.dot(x.astype(compute_dtype), w1.astype(compute_dtype),
                preferred_element_type=jnp.float32) + b1.astype(jnp.float32)
    h = _gelu_exact(h)
    y = jnp.dot(h.astype(compute_dtype), w2.astype(compute_dtype),
                preferred_element_type=jnp.float32) + b2.astype(jnp.float32)
    return y.astype(w1.dtype)


if __name__ == "__main__":
    key = jax.random.PRNGKey(0)

    # Case 1: the module's natural small shapes (hidden=None -> input_dim).
    kx, kp, kx2, kp2 = jax.random.split(key, 4)
    M, input_dim, out_dim = 8, 32, 16
    x = jax.random.normal(kx, (M, input_dim), jnp.float32)
    w1, b1, w2, b2 = init_params(kp, input_dim, out_dim, hidden=None)

    y = nonlinear_head(x, w1, b1, w2, b2)
    y = jax.block_until_ready(y)
    y_ref = _reference(x, w1, b1, w2, b2)
    assert y.shape == (M, out_dim)
    assert jnp.allclose(y, y_ref, atol=1e-3, rtol=1e-3), (
        float(jnp.max(jnp.abs(y - y_ref))))

    # Case 2: exercise M-tiling (grid > 1), row padding (M % tm != 0) and
    # feature padding (hidden/out not multiples of 128).
    M2, in2, hid2, out2 = 40, 64, 96, 24
    x2 = jax.random.normal(kx2, (M2, in2), jnp.float32)
    p2 = init_params(kp2, in2, out2, hidden=hid2)
    y2 = nonlinear_head(x2, *p2, tm=16)
    y2 = jax.block_until_ready(y2)
    y2_ref = _reference(x2, *p2)
    assert y2.shape == (M2, out2)
    assert jnp.allclose(y2, y2_ref, atol=1e-3, rtol=1e-3), (
        float(jnp.max(jnp.abs(y2 - y2_ref))))

    print("KERNEL_OK")
</pallas_src>

<mosaic_0001>
module attributes {stable_mosaic.version = 11 : i64} {
  func.func @_nonlinear_head_kernel(%arg0: i32, %arg1: memref<8x32xbf16, #tpu.memory_space<vmem>>, %arg2: memref<32x128xbf16, #tpu.memory_space<vmem>>, %arg3: memref<1x128xf32, #tpu.memory_space<vmem>>, %arg4: memref<128x128xbf16, #tpu.memory_space<vmem>>, %arg5: memref<1x128xf32, #tpu.memory_space<vmem>>, %arg6: memref<8x128xf32, #tpu.memory_space<vmem>>) attributes {dimension_semantics = [#tpu.dimension_semantics<parallel>], iteration_bounds = array<i64: 1>, scalar_prefetch = 0 : i64, scratch_operands = 0 : i64, tpu.core_type = #tpu.core_type<tc>, window_params = [{transform_indices = @transform_0, window_bounds = array<i64: 8, 32>}, {pipeline_mode = #tpu.pipeline_mode<synchronous>, transform_indices = @transform_1, window_bounds = array<i64: 32, 128>}, {pipeline_mode = #tpu.pipeline_mode<synchronous>, transform_indices = @transform_2, window_bounds = array<i64: 1, 128>}, {pipeline_mode = #tpu.pipeline_mode<synchronous>, transform_indices = @transform_3, window_bounds = array<i64: 128, 128>}, {pipeline_mode = #tpu.pipeline_mode<synchronous>, transform_indices = @transform_4, window_bounds = array<i64: 1, 128>}, {transform_indices = @transform_5, window_bounds = array<i64: 8, 128>}]} {
    %c0 = arith.constant 0 : index
    %c0_0 = arith.constant 0 : index
    %0 = vector.load %arg1[%c0, %c0_0] : memref<8x32xbf16, #tpu.memory_space<vmem>>, vector<8x32xbf16>
    %c0_1 = arith.constant 0 : index
    %c0_2 = arith.constant 0 : index
    %1 = vector.load %arg2[%c0_1, %c0_2] : memref<32x128xbf16, #tpu.memory_space<vmem>>, vector<32x128xbf16>
    %cst = arith.constant dense<0.000000e+00> : vector<8x128xf32>
    %2 = tpu.matmul %0, %1, %cst {dimension_numbers = #tpu.dot_dimension_numbers<[1], [0], [0], [1], [0, 0, 1, 1], [], []>} : vector<8x32xbf16>, vector<32x128xbf16>, vector<8x128xf32> -> vector<8x128xf32>
    %c0_3 = arith.constant 0 : index
    %c0_4 = arith.constant 0 : index
    %3 = vector.load %arg3[%c0_3, %c0_4] : memref<1x128xf32, #tpu.memory_space<vmem>>, vector<1x128xf32>
    %4 = vector.broadcast %3 : vector<1x128xf32> to vector<8x128xf32>
    %5 = arith.addf %2, %4 : vector<8x128xf32>
    %cst_5 = arith.constant 5.000000e-01 : f32
    %6 = vector.broadcast %cst_5 : f32 to vector<8x128xf32>
    %7 = arith.mulf %6, %5 : vector<8x128xf32>
    %cst_6 = arith.constant 0.707106769 : f32
    %8 = vector.broadcast %cst_6 : f32 to vector<8x128xf32>
    %9 = arith.mulf %5, %8 : vector<8x128xf32>
    %10 = math.erf %9 : vector<8x128xf32>
    %cst_7 = arith.constant 1.000000e+00 : f32
    %11 = vector.broadcast %cst_7 : f32 to vector<8x128xf32>
    %12 = arith.addf %11, %10 : vector<8x128xf32>
    %13 = arith.mulf %7, %12 : vector<8x128xf32>
    %14 = arith.truncf %13 : vector<8x128xf32> to vector<8x128xbf16>
    %c0_8 = arith.constant 0 : index
    %c0_9 = arith.constant 0 : index
    %15 = vector.load %arg4[%c0_8, %c0_9] : memref<128x128xbf16, #tpu.memory_space<vmem>>, vector<128x128xbf16>
    %cst_10 = arith.constant dense<0.000000e+00> : vector<8x128xf32>
    %16 = tpu.matmul %14, %15, %cst_10 {dimension_numbers = #tpu.dot_dimension_numbers<[1], [0], [0], [1], [0, 0, 1, 1], [], []>} : vector<8x128xbf16>, vector<128x128xbf16>, vector<8x128xf32> -> vector<8x128xf32>
    %c0_11 = arith.constant 0 : index
    %c0_12 = arith.constant 0 : index
    %17 = vector.load %arg5[%c0_11, %c0_12] : memref<1x128xf32, #tpu.memory_space<vmem>>, vector<1x128xf32>
    %18 = vector.broadcast %17 : vector<1x128xf32> to vector<8x128xf32>
    %19 = arith.addf %16, %18 : vector<8x128xf32>
    %c0_13 = arith.constant 0 : index
    %c0_14 = arith.constant 0 : index
    %20 = vector.load %arg6[%c0_13, %c0_14] : memref<8x128xf32, #tpu.memory_space<vmem>>, vector<8x128xf32>
    tpu.vector_store %arg6[%c0_13, %c0_14], %19 {strides = array<i32>} : memref<8x128xf32, #tpu.memory_space<vmem>>, vector<8x128xf32>,
    return
  }
  func.func @transform_0(%arg0: i32) -> (i32, i32) {
    %c0_i32 = arith.constant 0 : i32
    %c0_i32_0 = arith.constant 0 : i32
    return %arg0, %c0_i32 : i32, i32
  }
  func.func @transform_1(%arg0: i32) -> (i32, i32) {
    %c0_i32 = arith.constant 0 : i32
    %c0_i32_0 = arith.constant 0 : i32
    %c0_i32_1 = arith.constant 0 : i32
    return %c0_i32, %c0_i32_0 : i32, i32
  }
  func.func @transform_2(%arg0: i32) -> (i32, i32) {
    %c0_i32 = arith.constant 0 : i32
    %c0_i32_0 = arith.constant 0 : i32
    %c0_i32_1 = arith.constant 0 : i32
    return %c0_i32, %c0_i32_0 : i32, i32
  }
  func.func @transform_3(%arg0: i32) -> (i32, i32) {
    %c0_i32 = arith.constant 0 : i32
    %c0_i32_0 = arith.constant 0 : i32
    %c0_i32_1 = arith.constant 0 : i32
    return %c0_i32, %c0_i32_0 : i32, i32
  }
  func.func @transform_4(%arg0: i32) -> (i32, i32) {
    %c0_i32 = arith.constant 0 : i32
    %c0_i32_0 = arith.constant 0 : i32
    %c0_i32_1 = arith.constant 0 : i32
    return %c0_i32, %c0_i32_0 : i32, i32
  }
  func.func @transform_5(%arg0: i32) -> (i32, i32) {
    %c0_i32 = arith.constant 0 : i32
    %c0_i32_0 = arith.constant 0 : i32
    return %arg0, %c0_i32 : i32, i32
  }
}

</mosaic_0001>

<llo_original>
// kernel: tpu_custom_call.1
$region0: #{tpu_custom_call.1}
  #allocation0 [shape = 'u32[]', space=smem, size = 0x4, offset = 0x4, fixed_abs, tag = 'smem constant byte address 0x4 - core index']
  #allocation1 [shape = 'u32[144,128]{1,0:T(1,128)}', space=vmem, size = 0x12000, scoped, tag = 'internal scratch']
  %s0 = inlined_call_operand.hbm [shape: bf16[8,32], index: 0, kind: input, shape index: {}]
  %s1 = inlined_call_operand.hbm [shape: bf16[32,128], index: 1, kind: input, shape index: {}]
  %s2 = inlined_call_operand.hbm [shape: f32[1,128], index: 2, kind: input, shape index: {}]
  %s3 = inlined_call_operand.hbm [shape: bf16[128,128], index: 3, kind: input, shape index: {}]
  %s4 = inlined_call_operand.hbm [shape: f32[1,128], index: 4, kind: input, shape index: {}]
  %s5 = inlined_call_operand.hbm [shape: f32[8,128], index: 5, kind: output, shape index: {}]
  %s6 = sld [smem:[#allocation0]]
  $region50: #{tpu_custom_call.1} parent=0
    _
  %s8 = ssub.s32 1, %s6
  %s9 = scalar_select 0, %s8, %s6
  $region1: #{tpu_custom_call.1} parent=0
    #allocation2 [shape = 'u8[2048]{0}', space=vmem, size = 0x800, scoped, tag = 'input window, operand 0, single buffered']
    #allocation3 [shape = 's32[1]{0}', space=sflag, size = 0x4, scoped, tag = 'scoped memory for tpu_custom_call.1']
    #allocation4 [shape = 's32[1]{0}', space=sflag, size = 0x4, scoped, tag = 'scoped memory for tpu_custom_call.1']
    #allocation5 [shape = 'u8[8192]{0}', space=vmem, size = 0x2000, scoped, tag = 'input window, operand 1, single buffered']
    #allocation6 [shape = 's32[1]{0}', space=sflag, size = 0x4, scoped, tag = 'scoped memory for tpu_custom_call.1']
    #allocation7 [shape = 'u8[512]{0}', space=vmem, size = 0x400, scoped, tag = 'input window, operand 2, single buffered']
    #allocation8 [shape = 'u8[32768]{0}', space=vmem, size = 0x8000, scoped, tag = 'input window, operand 3, single buffered']
    #allocation9 [shape = 's32[1]{0}', space=sflag, size = 0x4, scoped, tag = 'scoped memory for tpu_custom_call.1']
    #allocation10 [shape = 'u8[512]{0}', space=vmem, size = 0x400, scoped, tag = 'input window, operand 4, single buffered']
    #allocation11 [shape = 'u8[4096]{0}', space=vmem, size = 0x1000, scoped, tag = 'output window, operand 0, single buffered']
    %10 = vsyncpa [#allocation3], 0
    %11 = vsyncpa [#allocation6], 0
    %12 = vsyncpa [#allocation9], 0
    %13 = vsyncpa [#allocation4], 0
    // Predicated region
    $region2: #{tpu_custom_call.1} parent=1 // pred_check
      _
    $region3: #{tpu_custom_call.1} parent=1 // pred_check_branch
      %15 = sbr.rel (0) target = $region5
    $region4: #{tpu_custom_call.1} parent=1 // pred_region
      %s17 = ssub.s32 64, 64
      %18 = vsyncadd [#allocation3], %s17
      %s20 = sshll.u32 [#allocation2], 4
      %s21 = int_to_ptr.vmem [resolvable:$true] %s20
      %23 = dma.hbm_to_vmem [thread:$0]  %s0, 64, %s21, [#allocation3]
    $region5: #{tpu_custom_call.1} parent=1 // pred_fallthru
      _
    // Predicated region
    $region6: #{tpu_custom_call.1} parent=1 // pred_check
      _
    $region7: #{tpu_custom_call.1} parent=1 // pred_check_branch
      %25 = sbr.rel (0) target = $region9
    $region8: #{tpu_custom_call.1} parent=1 // pred_region
      %s27 = ssub.s32 256, 256
      %28 = vsyncadd [#allocation6], %s27
      %s29 = sshll.u32 [#allocation5], 4
      %s30 = int_to_ptr.vmem [resolvable:$true] %s29
      %35 = dma.hbm_to_vmem [thread:$0]  %s1, 256, %s30, [#allocation6], 64, 64, 4
    $region9: #{tpu_custom_call.1} parent=1 // pred_fallthru
      _
    // Predicated region
    $region10: #{tpu_custom_call.1} parent=1 // pred_check
      _
    $region11: #{tpu_custom_call.1} parent=1 // pred_check_branch
      %37 = sbr.rel (0) target = $region13
    $region12: #{tpu_custom_call.1} parent=1 // pred_region
      %s39 = ssub.s32 16, 16
      %40 = vsyncadd [#allocation6], %s39
      %s42 = sshll.u32 [#allocation7], 4
      %s43 = int_to_ptr.vmem [resolvable:$true] %s42
      %45 = dma.hbm_to_vmem [thread:$0]  %s2, 16, %s43, [#allocation6]
    $region13: #{tpu_custom_call.1} parent=1 // pred_fallthru
      _
    // Predicated region
    $region14: #{tpu_custom_call.1} parent=1 // pred_check
      _
    $region15: #{tpu_custom_call.1} parent=1 // pred_check_branch
      %47 = sbr.rel (0) target = $region17
    $region16: #{tpu_custom_call.1} parent=1 // pred_region
      %s49 = ssub.s32 1024, 1024
      %50 = vsyncadd [#allocation9], %s49
      %s51 = sshll.u32 [#allocation8], 4
      %s52 = int_to_ptr.vmem [resolvable:$true] %s51
      %57 = dma.hbm_to_vmem [thread:$0]  %s3, 1024, %s52, [#allocation9], 64, 64, 4
    $region17: #{tpu_custom_call.1} parent=1 // pred_fallthru
      _
    // Predicated region
    $region18: #{tpu_custom_call.1} parent=1 // pred_check
      _
    $region19: #{tpu_custom_call.1} parent=1 // pred_check_branch
      %59 = sbr.rel (0) target = $region21
    $region20: #{tpu_custom_call.1} parent=1 // pred_region
      %s61 = ssub.s32 16, 16
      %62 = vsyncadd [#allocation9], %s61
      %s64 = sshll.u32 [#allocation10], 4
      %s65 = int_to_ptr.vmem [resolvable:$true] %s64
      %67 = dma.hbm_to_vmem [thread:$0]  %s4, 16, %s65, [#allocation9]
    $region21: #{tpu_custom_call.1} parent=1 // pred_fallthru
      _
    // Predicated region
    $region22: #{tpu_custom_call.1} parent=1 // pred_check
      _
    $region23: #{tpu_custom_call.1} parent=1 // pred_check_branch
      %69 = sbr.rel (0) target = $region25
    $region24: #{tpu_custom_call.1} parent=1 // pred_region
      %70 = dma.done [#allocation3], 64
    $region25: #{tpu_custom_call.1} parent=1 // pred_fallthru
      _
    // Predicated region
    $region26: #{tpu_custom_call.1} parent=1 // pred_check
      _
    $region27: #{tpu_custom_call.1} parent=1 // pred_check_branch
      %72 = sbr.rel (0) target = $region29
    $region28: #{tpu_custom_call.1} parent=1 // pred_region
      %73 = dma.done [#allocation6], 256
    $region29: #{tpu_custom_call.1} parent=1 // pred_fallthru
      _
    // Predicated region
    $region30: #{tpu_custom_call.1} parent=1 // pred_check
      _
    $region31: #{tpu_custom_call.1} parent=1 // pred_check_branch
      %75 = sbr.rel (0) target = $region33
    $region32: #{tpu_custom_call.1} parent=1 // pred_region
      %76 = dma.done [#allocation6], 16
    $region33: #{tpu_custom_call.1} parent=1 // pred_fallthru
      _
    // Predicated region
    $region34: #{tpu_custom_call.1} parent=1 // pred_check
      _
    $region35: #{tpu_custom_call.1} parent=1 // pred_check_branch
      %78 = sbr.rel (0) target = $region37
    $region36: #{tpu_custom_call.1} parent=1 // pred_region
      %79 = dma.done [#allocation9], 1024
    $region37: #{tpu_custom_call.1} parent=1 // pred_fallthru
      _
    // Predicated region
    $region38: #{tpu_custom_call.1} parent=1 // pred_check
      _
    $region39: #{tpu_custom_call.1} parent=1 // pred_check_branch
      %81 = sbr.rel (0) target = $region41
    $region40: #{tpu_custom_call.1} parent=1 // pred_region
      %82 = dma.done [#allocation9], 16
    $region41: #{tpu_custom_call.1} parent=1 // pred_fallthru
      _
    %v84 = vld [vmem:[#allocation2] sm:$0xf]
    %v85 = vld [vmem:[#allocation5] sm:$0xf]
    %v86 = vld [vmem:[#allocation5 + $0x4] sm:$0xf]
    %v87 = vld [vmem:[#allocation5 + $0x8] sm:$0xf]
    %v88 = vld [vmem:[#allocation5 + $0xc] sm:$0xf]
    %v89 = vld [vmem:[#allocation7] sm:$0x1]
    %v91 = vlaneseq
    %v92 = vshrl.u32 %v91, 7
    %v93 = vsub.s32 0, %v92
    %v94 = vrot.slane %v89, %v93
    %v100 = vunpack.c.l.b16 %v85
    %v101 = vunpack.c.l.b16 %v86
    %v102 = vunpack.c.l.b16 %v87
    %v103 = vunpack.c.l.b16 %v88
    %v104 = vpack.c.b16 %v101, %v100
    %v105 = vpack.c.b16 %v103, %v102
    %vm108 = vcmask 261120
    %v110 = vsel %vm108, %v84, 0
    %112 = vmatprep.subr.bf16.mxu0 0
    %113 = vmatpush1.bf16.msra.mxu0 %v104
    %114 = vmatprep.subr.bf16.mxu0 0
    %115 = vmatpush1.bf16.msra.mxu0 %v105
    %116 = vmatprep.subr.bf16.mxu0 0
    %117 = vmatpush1.bf16.msra.mxu0 0
    %118 = vmatprep.subr.bf16.mxu0 0
    %119 = vmatpush1.bf16.msra.mxu0 0
    %120 = vmatprep.subr.bf16.mxu0 0
    %121 = vmatpush1.bf16.msra.mxu0 0
    %122 = vmatprep.subr.bf16.mxu0 0
    %123 = vmatpush1.bf16.msra.mxu0 0
    %124 = vmatprep.subr.bf16.mxu0 0
    %125 = vmatpush1.bf16.msra.mxu0 0
    %126 = vmatprep.subr.bf16.mxu0 0
    %127 = vmatpush1.bf16.msra.mxu0 0
    %128 = vmatprep.subr.bf16.mxu0 0
    %129 = vmatpush1.bf16.msra.mxu0 0
    %130 = vmatprep.subr.bf16.mxu0 0
    %131 = vmatpush1.bf16.msra.mxu0 0
    %132 = vmatprep.subr.bf16.mxu0 0
    %133 = vmatpush1.bf16.msra.mxu0 0
    %134 = vmatprep.subr.bf16.mxu0 0
    %135 = vmatpush1.bf16.msra.mxu0 0
    %136 = vmatprep.subr.bf16.mxu0 0
    %137 = vmatpush1.bf16.msra.mxu0 0
    %138 = vmatprep.subr.bf16.mxu0 0
    %139 = vmatpush1.bf16.msra.mxu0 0
    %140 = vmatprep.subr.bf16.mxu0 0
    %141 = vmatpush1.bf16.msra.mxu0 0
    %142 = vmatprep.subr.bf16.mxu0 0
    %143 = vmatpush1.bf16.msra.mxu0 0
    %144 = vmatprep.mubr.bf16.mxu0 0
    %145 = vmatmul.mubr.bf16.gmra.mrb[0].mxu0 %v110
    %v146 = vpop.f32.mrb[0].mxu0
    %v147 = vadd.f32 %v94, %v146
    %v148 = vpop.f32.mrb[0].mxu0
    %v149 = vpop.f32.mrb[0].mxu0
    %v150 = vpop.f32.mrb[0].mxu0
    %151 = vdwg.mxu0
    %v152 = vmul.f32 %v147, 0.5
    %v153 = vmul.f32 %v147, 0.70710677
    %v154 = verf.f32.pop %v153
    %v155 = vadd.f32 %v154, 1.0
    %v156 = vmul.f32 %v152, %v155
    %v157 = vpack.c.bf16 %v156, %v156
    %v158 = vld [vmem:[#allocation8] sm:$0xf]
    %v159 = vld [vmem:[#allocation8 + $0x4] sm:$0xf]
    %v160 = vld [vmem:[#allocation8 + $0x8] sm:$0xf]
    %v161 = vld [vmem:[#allocation8 + $0xc] sm:$0xf]
    %v162 = vld [vmem:[#allocation8 + $0x10] sm:$0xf]
    %v163 = vld [vmem:[#allocation8 + $0x14] sm:$0xf]
    %v164 = vld [vmem:[#allocation8 + $0x18] sm:$0xf]
    %v165 = vld [vmem:[#allocation8 + $0x1c] sm:$0xf]
    %v166 = vld [vmem:[#allocation8 + $0x20] sm:$0xf]
    %v167 = vld [vmem:[#allocation8 + $0x24] sm:$0xf]
    %v168 = vld [vmem:[#allocation8 + $0x28] sm:$0xf]
    %v169 = vld [vmem:[#allocation8 + $0x2c] sm:$0xf]
    %v170 = vld [vmem:[#allocation8 + $0x30] sm:$0xf]
    %v171 = vld [vmem:[#allocation8 + $0x34] sm:$0xf]
    %v172 = vld [vmem:[#allocation8 + $0x38] sm:$0xf]
    %v173 = vld [vmem:[#allocation8 + $0x3c] sm:$0xf]
    %v174 = vld [vmem:[#allocation10] sm:$0x1]
    %v176 = vlaneseq
    %v177 = vshrl.u32 %v176, 7
    %v178 = vsub.s32 0, %v177
    %v179 = vrot.slane %v174, %v178
    %v197 = vunpack.c.l.b16 %v158
    %v198 = vunpack.c.l.b16 %v159
    %v199 = vunpack.c.l.b16 %v160
    %v200 = vunpack.c.l.b16 %v161
    %v201 = vunpack.c.l.b16 %v162
    %v202 = vunpack.c.l.b16 %v163
    %v203 = vunpack.c.l.b16 %v164
    %v204 = vunpack.c.l.b16 %v165
    %v205 = vunpack.c.l.b16 %v166
    %v206 = vunpack.c.l.b16 %v167
    %v207 = vunpack.c.l.b16 %v168
    %v208 = vunpack.c.l.b16 %v169
    %v209 = vunpack.c.l.b16 %v170
    %v210 = vunpack.c.l.b16 %v171
    %v211 = vunpack.c.l.b16 %v172
    %v212 = vunpack.c.l.b16 %v173
    %v213 = vpack.c.b16 %v198, %v197
    %v214 = vpack.c.b16 %v200, %v199
    %v215 = vpack.c.b16 %v202, %v201
    %v216 = vpack.c.b16 %v204, %v203
    %v217 = vpack.c.b16 %v206, %v205
    %v218 = vpack.c.b16 %v208, %v207
    %v219 = vpack.c.b16 %v210, %v209
    %v220 = vpack.c.b16 %v212, %v211
    %229 = vmatprep.subr.bf16.mxu0 0
    %230 = vmatpush1.bf16.msra.mxu0 %v213
    %231 = vmatprep.subr.bf16.mxu0 0
    %232 = vmatpush1.bf16.msra.mxu0 %v214
    %233 = vmatprep.subr.bf16.mxu0 0
    %234 = vmatpush1.bf16.msra.mxu0 %v215
    %235 = vmatprep.subr.bf16.mxu0 0
    %236 = vmatpush1.bf16.msra.mxu0 %v216
    %237 = vmatprep.subr.bf16.mxu0 0
    %238 = vmatpush1.bf16.msra.mxu0 %v217
    %239 = vmatprep.subr.bf16.mxu0 0
    %240 = vmatpush1.bf16.msra.mxu0 %v218
    %241 = vmatprep.subr.bf16.mxu0 0
    %242 = vmatpush1.bf16.msra.mxu0 %v219
    %243 = vmatprep.subr.bf16.mxu0 0
    %244 = vmatpush1.bf16.msra.mxu0 %v220
    %245 = vmatprep.subr.bf16.mxu0 0
    %246 = vmatpush1.bf16.msra.mxu0 0
    %247 = vmatprep.subr.bf16.mxu0 0
    %248 = vmatpush1.bf16.msra.mxu0 0
    %249 = vmatprep.subr.bf16.mxu0 0
    %250 = vmatpush1.bf16.msra.mxu0 0
    %251 = vmatprep.subr.bf16.mxu0 0
    %252 = vmatpush1.bf16.msra.mxu0 0
    %253 = vmatprep.subr.bf16.mxu0 0
    %254 = vmatpush1.bf16.msra.mxu0 0
    %255 = vmatprep.subr.bf16.mxu0 0
    %256 = vmatpush1.bf16.msra.mxu0 0
    %257 = vmatprep.subr.bf16.mxu0 0
    %258 = vmatpush1.bf16.msra.mxu0 0
    %259 = vmatprep.subr.bf16.mxu0 0
    %260 = vmatpush1.bf16.msra.mxu0 0
    %261 = vmatprep.mubr.bf16.mxu0 0
    %262 = vmatmul.mubr.bf16.gmra.mrb[0].mxu0 %v157
    %v263 = vpop.f32.mrb[0].mxu0
    %v264 = vadd.f32 %v179, %v263
    %v265 = vpop.f32.mrb[0].mxu0
    %v266 = vpop.f32.mrb[0].mxu0
    %v267 = vpop.f32.mrb[0].mxu0
    %268 = vdwg.mxu0
    %269 = vst [vmem:[#allocation11] sm:$0xff] %v264
    // Predicated region
    $region42: #{tpu_custom_call.1} parent=1 // pred_check
      _
    $region43: #{tpu_custom_call.1} parent=1 // pred_check_branch
      %271 = sbr.rel (0) target = $region45
    $region44: #{tpu_custom_call.1} parent=1 // pred_region
      %s273 = ssub.s32 128, 128
      %274 = vsyncadd [#allocation4], %s273
      %s276 = sshll.u32 [#allocation11], 4
      %s277 = int_to_ptr.vmem [resolvable:$true] %s276
      %279 = dma.vmem_to_hbm [thread:$0]  %s277, 128, %s5, [#allocation4]
    $region45: #{tpu_custom_call.1} parent=1 // pred_fallthru
      _
    // Predicated region
    $region46: #{tpu_custom_call.1} parent=1 // pred_check
      _
    $region47: #{tpu_custom_call.1} parent=1 // pred_check_branch
      %281 = sbr.rel (0) target = $region49
    $region48: #{tpu_custom_call.1} parent=1 // pred_region
      %282 = dma.done [#allocation4], 128
    $region49: #{tpu_custom_call.1} parent=1 // pred_fallthru
      _
    %283 = vsyncpa [#allocation3], 1
    %284 = vsyncpa [#allocation6], 1
    %285 = vsyncpa [#allocation9], 1
    %286 = vsyncpa [#allocation4], 1

</llo_original>
